<compile_context>
chip_gen: v7x
topology: tpu7x:2x2x1
jax: 0.10.0
libtpu: 0.0.40
codegen_flags: <defaults>
</compile_context>

<pallas_src>
import math

import jax
import jax.numpy as jnp
from jax.experimental import pallas as pl
from jax.experimental.pallas import tpu as pltpu

_LANE = 128                      # TPU lane width (last dim of a vreg)
_SUBLANE = 8                     # sublane granularity (second-to-last dim)
_TARGET_TILE_BYTES = 4 << 20     # ~4 MiB per buffer amortizes grid-step cost
_VMEM_LIMIT_BYTES = 32 << 20     # covers v5e's 16 MiB default scoped limit


def _copy_kernel(x_ref, o_ref):
    o_ref[...] = x_ref[...]


def identity_copy(x):
    """Materialize a fresh copy of x via a lane-dense tiled Pallas kernel.

    Layout: flatten, copy the lane-aligned bulk as [rows, 128] tiles of
    ~4 MiB per buffer, handle any <128-element tail outside Pallas.
    """
    orig_shape = x.shape
    orig_dtype = x.dtype
    total = int(math.prod(orig_shape)) if orig_shape else 1
    if total == 0:
        return x

    flat = x.reshape(total)
    itemsize = jnp.dtype(orig_dtype).itemsize

    rows = total // _LANE
    rem = total - rows * _LANE

    pieces = []
    if rows > 0:
        main = (flat if rem == 0 else flat[: rows * _LANE]).reshape(rows, _LANE)

        bytes_per_row = _LANE * itemsize
        # Target ~4 MiB per buffer; keep rows a multiple of 8 sublanes.
        target_rows = max(
            _SUBLANE,
            (_TARGET_TILE_BYTES // bytes_per_row) // _SUBLANE * _SUBLANE,
        )

        if rows <= _SUBLANE:
            # Tiny array: single block equal to the full array dims (allowed
            # even when not a multiple of 8).
            tile = rows
        else:
            max8 = (rows // _SUBLANE) * _SUBLANE      # largest mult-of-8 <= rows
            tile = min(target_rows, max8)
            if tile >= rows:
                # Would be a single grid step: halve the tile (rounded up to a
                # multiple of 8) so v7x's two TensorCores both get work.
                tile = ((rows // 2 + _SUBLANE - 1) // _SUBLANE) * _SUBLANE

        grid = (pl.cdiv(rows, tile),)
        cost = pl.CostEstimate(
            flops=0,
            transcendentals=0,
            bytes_accessed=2 * rows * _LANE * itemsize,
        )

        main_out = pl.pallas_call(
            _copy_kernel,
            out_shape=jax.ShapeDtypeStruct((rows, _LANE), orig_dtype),
            grid=grid,
            in_specs=[pl.BlockSpec((tile, _LANE), lambda i: (i, 0))],
            out_specs=pl.BlockSpec((tile, _LANE), lambda i: (i, 0)),
            compiler_params=pltpu.CompilerParams(
                dimension_semantics=("parallel",),
                vmem_limit_bytes=_VMEM_LIMIT_BYTES,
            ),
            cost_estimate=cost,
        )(main)
        pieces.append(main_out.reshape(rows * _LANE))

    if rem > 0:
        # <128-element tail: plain jnp slice/concat outside Pallas (per review).
        pieces.append(flat[rows * _LANE:])

    out = pieces[0] if len(pieces) == 1 else jnp.concatenate(pieces)
    return out.reshape(orig_shape)


class SrcParserBase:
    """JAX/Pallas counterpart of the (abstract) PyTorch SrcParserBase."""

    def __init__(self) -> None:
        # Base class has no parameters.
        pass

    def forward(self, x, lengths):
        # Zero-cost pass-through: the base class defines no compute, so the
        # optimal "kernel" is no kernel at all (no HBM traffic, no grid
        # overhead).  `lengths` has no semantics in the base class.
        del lengths
        return x

    def __call__(self, x, lengths):
        return self.forward(x, lengths)

    # Abstract methods — kept as in the reference module.
    def sample(self, x, lengths, **kwargs):
        raise NotImplementedError

    def argmax(self, x, lengths, **kwargs):
        raise NotImplementedError

    def entropy(self, x, lengths, **kwargs):
        raise NotImplementedError


if __name__ == "__main__":
    key = jax.random.PRNGKey(0)
    kx, kl, k2, k3 = jax.random.split(key, 4)

    # --- 1. Base-class forward: zero-cost pass-through ---------------------
    B, S, H = 2, 8, 32
    x = jax.random.normal(kx, (B, S, H), dtype=jnp.float32)
    lengths = jax.random.randint(kl, (B,), minval=1, maxval=S + 1, dtype=jnp.int32)

    parser = SrcParserBase()
    out = jax.block_until_ready(parser(x, lengths))
    assert out.shape == x.shape and out.dtype == x.dtype
    assert bool(jnp.array_equal(out, x))

    # --- 2. Pallas identity-copy kernel: tiny path (rows <= 8) -------------
    y_small = jax.block_until_ready(identity_copy(x))
    assert y_small.shape == x.shape and y_small.dtype == x.dtype
    assert bool(jnp.array_equal(y_small, x))

    # --- 3. Pallas identity-copy kernel: tiled lane-dense path (>=2 steps) -
    x_med = jax.random.normal(k2, (4, 64, 256), dtype=jnp.bfloat16)
    y_med = jax.block_until_ready(identity_copy(x_med))
    assert y_med.shape == x_med.shape and y_med.dtype == x_med.dtype
    assert bool(jnp.array_equal(y_med, x_med))

    # --- 4. Pallas identity-copy kernel: non-multiple-of-128 tail path -----
    x_rag = jax.random.normal(k3, (3, 7, 50), dtype=jnp.float32)
    y_rag = jax.block_until_ready(identity_copy(x_rag))
    assert y_rag.shape == x_rag.shape and y_rag.dtype == x_rag.dtype
    assert bool(jnp.array_equal(y_rag, x_rag))

    print("KERNEL_OK")
</pallas_src>

<mosaic_0001>
module attributes {stable_mosaic.version = 11 : i64} {
  func.func @_copy_kernel(%arg0: i32, %arg1: memref<4x128xf32, #tpu.memory_space<vmem>>, %arg2: memref<4x128xf32, #tpu.memory_space<vmem>>) attributes {dimension_semantics = [#tpu.dimension_semantics<parallel>], iteration_bounds = array<i64: 1>, scalar_prefetch = 0 : i64, scratch_operands = 0 : i64, tpu.core_type = #tpu.core_type<tc>, window_params = [{transform_indices = @transform_0, window_bounds = array<i64: 4, 128>}, {transform_indices = @transform_1, window_bounds = array<i64: 4, 128>}]} {
    %c0 = arith.constant 0 : index
    %c0_0 = arith.constant 0 : index
    %0 = vector.load %arg1[%c0, %c0_0] : memref<4x128xf32, #tpu.memory_space<vmem>>, vector<4x128xf32>
    %c0_1 = arith.constant 0 : index
    %c0_2 = arith.constant 0 : index
    %1 = vector.load %arg2[%c0_1, %c0_2] : memref<4x128xf32, #tpu.memory_space<vmem>>, vector<4x128xf32>
    tpu.vector_store %arg2[%c0_1, %c0_2], %0 {strides = array<i32>} : memref<4x128xf32, #tpu.memory_space<vmem>>, vector<4x128xf32>,
    return
  }
  func.func @transform_0(%arg0: i32) -> (i32, i32) {
    %c0_i32 = arith.constant 0 : i32
    %c0_i32_0 = arith.constant 0 : i32
    return %arg0, %c0_i32 : i32, i32
  }
  func.func @transform_1(%arg0: i32) -> (i32, i32) {
    %c0_i32 = arith.constant 0 : i32
    %c0_i32_0 = arith.constant 0 : i32
    return %arg0, %c0_i32 : i32, i32
  }
}

</mosaic_0001>

<llo_original>
// kernel: tpu_custom_call.1
$region0: #{tpu_custom_call.1}
  #allocation0 [shape = 'u32[]', space=smem, size = 0x4, offset = 0x4, fixed_abs, tag = 'smem constant byte address 0x4 - core index']
  #allocation1 [shape = 'u32[144,128]{1,0:T(1,128)}', space=vmem, size = 0x12000, scoped, tag = 'internal scratch']
  %s0 = inlined_call_operand.hbm [shape: f32[4,128], index: 0, kind: input, shape index: {}]
  %s1 = inlined_call_operand.hbm [shape: f32[4,128], index: 1, kind: output, shape index: {}]
  %s2 = sld [smem:[#allocation0]]
  $region18: #{tpu_custom_call.1} parent=0
    _
  %s4 = ssub.s32 1, %s2
  %s5 = scalar_select 0, %s4, %s2
  $region1: #{tpu_custom_call.1} parent=0
    #allocation2 [shape = 'u8[2048]{0}', space=vmem, size = 0x800, scoped, tag = 'input window, operand 0, single buffered']
    #allocation3 [shape = 's32[1]{0}', space=sflag, size = 0x4, scoped, tag = 'scoped memory for tpu_custom_call.1']
    #allocation4 [shape = 's32[1]{0}', space=sflag, size = 0x4, scoped, tag = 'scoped memory for tpu_custom_call.1']
    #allocation5 [shape = 'u8[2048]{0}', space=vmem, size = 0x800, scoped, tag = 'output window, operand 0, single buffered']
    %6 = vsyncpa [#allocation3], 0
    %7 = vsyncpa [#allocation4], 0
    // Predicated region
    $region2: #{tpu_custom_call.1} parent=1 // pred_check
      _
    $region3: #{tpu_custom_call.1} parent=1 // pred_check_branch
      %9 = sbr.rel (0) target = $region5
    $region4: #{tpu_custom_call.1} parent=1 // pred_region
      %s11 = ssub.s32 64, 64
      %12 = vsyncadd [#allocation3], %s11
      %s14 = sshll.u32 [#allocation2], 4
      %s15 = int_to_ptr.vmem [resolvable:$true] %s14
      %17 = dma.hbm_to_vmem [thread:$0]  %s0, 64, %s15, [#allocation3]
    $region5: #{tpu_custom_call.1} parent=1 // pred_fallthru
      _
    // Predicated region
    $region6: #{tpu_custom_call.1} parent=1 // pred_check
      _
    $region7: #{tpu_custom_call.1} parent=1 // pred_check_branch
      %19 = sbr.rel (0) target = $region9
    $region8: #{tpu_custom_call.1} parent=1 // pred_region
      %20 = dma.done [#allocation3], 64
    $region9: #{tpu_custom_call.1} parent=1 // pred_fallthru
      _
    %v21 = vld [vmem:[#allocation2] sm:$0xf]
    %22 = vst [vmem:[#allocation5] sm:$0xf] %v21
    // Predicated region
    $region10: #{tpu_custom_call.1} parent=1 // pred_check
      _
    $region11: #{tpu_custom_call.1} parent=1 // pred_check_branch
      %24 = sbr.rel (0) target = $region13
    $region12: #{tpu_custom_call.1} parent=1 // pred_region
      %s26 = ssub.s32 64, 64
      %27 = vsyncadd [#allocation4], %s26
      %s29 = sshll.u32 [#allocation5], 4
      %s30 = int_to_ptr.vmem [resolvable:$true] %s29
      %32 = dma.vmem_to_hbm [thread:$0]  %s30, 64, %s1, [#allocation4]
    $region13: #{tpu_custom_call.1} parent=1 // pred_fallthru
      _
    // Predicated region
    $region14: #{tpu_custom_call.1} parent=1 // pred_check
      _
    $region15: #{tpu_custom_call.1} parent=1 // pred_check_branch
      %34 = sbr.rel (0) target = $region17
    $region16: #{tpu_custom_call.1} parent=1 // pred_region
      %35 = dma.done [#allocation4], 64
    $region17: #{tpu_custom_call.1} parent=1 // pred_fallthru
      _
    %36 = vsyncpa [#allocation3], 1
    %37 = vsyncpa [#allocation4], 1

</llo_original>
